<compile_context>
chip_gen: v5e
topology: v5e:2x2
jax: 0.10.0
libtpu: 0.0.40
codegen_flags: <defaults>
</compile_context>

<pallas_src>
import functools

import jax
import jax.numpy as jnp
from jax.experimental import pallas as pl
from jax.experimental.pallas import tpu as pltpu

_LANE = 128
_SUB = 8
_ALIGN = _SUB * _LANE            # 1024: guarantees (rows, 128) with rows % 8 == 0
_EPS = 1e-12                     # matches F.normalize default eps
_NUM_CORES = 2                   # v7x megacore split; harmless (sequential) on 1-TC chips
_VMEM_INPUT_BUDGET = 8 * 1024 * 1024   # double-buffered input bytes per grid step
_TARGET_ROWS = 1024              # ~86% of HBM roofline (512 -> 85%, 1024 -> 86%)


def _div_kernel(xs_ref, xg_ref, o_ref, *, rows_chunk, chunks_per_core,
                total_rows, need_mask):
    """One (core, row-chunk) grid step: accumulate raw partial sums.

    xs_ref : (rows_chunk, 128)     chunk of flattened x_single (VMEM, native dtype)
    xg_ref : (G, rows_chunk, 128)  matching chunk of flattened x_group (VMEM)
    o_ref  : (3, 8, 128)           per-core running [s.s, (Σg).(Σg), s.(Σg)] partials
    """
    c = pl.program_id(0)
    i = pl.program_id(1)

    @pl.when(i == 0)
    def _():
        o_ref[...] = jnp.zeros_like(o_ref)

    xs = xs_ref[...].astype(jnp.float32)                   # (R, 128)
    gs = jnp.sum(xg_ref[...].astype(jnp.float32), axis=0)  # (R, 128) raw group sum

    if need_mask:
        # Ragged tail / phantom chunks: zero everything at/after the real rows.
        base = (c * chunks_per_core + i) * rows_chunk
        row_ids = jax.lax.broadcasted_iota(jnp.int32, (rows_chunk, _LANE), 0) + base
        valid = row_ids < total_rows
        xs = jnp.where(valid, xs, 0.0)
        gs = jnp.where(valid, gs, 0.0)

    # Reduce rows to a single (8, 128) vreg per quantity.  The reshape keeps the
    # (8, 128) tile structure intact, so the reduction is pure elementwise vreg
    # adds (VPU) — no per-chunk cross-lane (XLU) reduce and no SMEM scalar chain.
    r8 = rows_chunk // _SUB
    ss = jnp.sum((xs * xs).reshape(r8, _SUB, _LANE), axis=0)
    gg = jnp.sum((gs * gs).reshape(r8, _SUB, _LANE), axis=0)
    sg = jnp.sum((xs * gs).reshape(r8, _SUB, _LANE), axis=0)

    o_ref[0] = o_ref[0] + ss
    o_ref[1] = o_ref[1] + gg
    o_ref[2] = o_ref[2] + sg


@jax.jit
def div_forward(x_single, x_group):
    """x_single: (...,), x_group: (G, ...) with x_group[k] shaped like x_single."""
    G = x_group.shape[0]
    n = x_single.size
    assert x_group.size == G * n, "x_group[k] must match x_single's element count"

    xs_flat = x_single.reshape(-1)          # native dtype, no copy
    xg_flat = x_group.reshape(G, -1)

    # Only zero-pad when n is not (8*128)-aligned (uncommon); zero padding does
    # not change any dot product / norm.  Aligned case is a pure metadata reshape.
    n_pad = -(-n // _ALIGN) * _ALIGN
    if n_pad != n:
        xs_flat = jnp.pad(xs_flat, (0, n_pad - n))
        xg_flat = jnp.pad(xg_flat, ((0, 0), (0, n_pad - n)))
    rows = n_pad // _LANE                   # multiple of 8

    xs = xs_flat.reshape(rows, _LANE)
    xg = xg_flat.reshape(G, rows, _LANE)

    # Row-chunk size from a VMEM byte budget (double-buffered inputs), capped at
    # the ~86%-of-roofline point and at the actual number of rows.  The budget
    # keeps the footprint safe on v5e's 16 MiB scoped default and v7x's 64 MiB
    # physical VMEM even before raising vmem_limit_bytes.
    xs_item = jnp.dtype(x_single.dtype).itemsize
    xg_item = jnp.dtype(x_group.dtype).itemsize
    per_row = 2 * _LANE * (xs_item + G * xg_item)
    rows_budget = max(_SUB, (_VMEM_INPUT_BUDGET // per_row) // _SUB * _SUB)
    rows_chunk = min(_TARGET_ROWS, rows_budget, rows)

    total_chunks = -(-rows // rows_chunk)
    cpc = -(-total_chunks // _NUM_CORES)    # chunks per core
    need_mask = (rows % rows_chunk != 0) or (total_chunks % _NUM_CORES != 0)

    def chunk_idx(c, i):
        # Clamp phantom (beyond-the-end) chunks onto the last real chunk; their
        # contribution is zeroed by the in-kernel row mask.
        return jnp.minimum(c * cpc + i, total_chunks - 1)

    kernel = functools.partial(
        _div_kernel, rows_chunk=rows_chunk, chunks_per_core=cpc,
        total_rows=rows, need_mask=need_mask)

    partials = pl.pallas_call(
        kernel,
        out_shape=jax.ShapeDtypeStruct((_NUM_CORES, 3, _SUB, _LANE), jnp.float32),
        grid=(_NUM_CORES, cpc),
        in_specs=[
            pl.BlockSpec((rows_chunk, _LANE), lambda c, i: (chunk_idx(c, i), 0)),
            pl.BlockSpec((G, rows_chunk, _LANE),
                         lambda c, i: (0, chunk_idx(c, i), 0)),
        ],
        out_specs=pl.BlockSpec((None, 3, _SUB, _LANE), lambda c, i: (c, 0, 0, 0)),
        compiler_params=pltpu.CompilerParams(
            dimension_semantics=("parallel", "arbitrary"),
            vmem_limit_bytes=32 * 1024 * 1024),
    )(xs, xg)

    # Tiny finalize (one cross-lane reduce over 2*3*1024 floats + scalar math).
    sums = jnp.sum(partials, axis=(0, 2, 3))    # [Σ s², Σ (Σ_k g_k)², Σ s·(Σ_k g_k)]
    inv_g = 1.0 / G
    ss = sums[0]
    gg = sums[1] * (inv_g * inv_g)
    sg = sums[2] * inv_g
    ns = jnp.maximum(jnp.sqrt(ss), _EPS)
    ng = jnp.maximum(jnp.sqrt(gg), _EPS)
    a = ss / (ns * ns)          # u . u
    d = gg / (ng * ng)          # v . v
    c = sg / (ns * ng)          # u . v
    return a * d - c * c        # det of [[a, c], [c, d]]


def _reference_div(x_single, x_group):
    """Pure-JAX reference mirroring the PyTorch module (2x2 det done analytically)."""
    g = jnp.mean(x_group, axis=0)
    u = x_single.reshape(1, -1)
    v = g.reshape(1, -1)
    u = u / jnp.maximum(jnp.linalg.norm(u, axis=1, keepdims=True), _EPS)
    v = v / jnp.maximum(jnp.linalg.norm(v, axis=1, keepdims=True), _EPS)
    fv = jnp.concatenate([u, v], axis=0)
    km = fv @ fv.T
    return km[0, 0] * km[1, 1] - km[0, 1] * km[1, 0]


if __name__ == "__main__":
    key = jax.random.PRNGKey(0)
    k1, k2 = jax.random.split(key)

    # Small shapes consistent with the module: a single feature map and a
    # group of 2 feature maps, channels=4, spatial=16x16.
    x_single = jax.random.normal(k1, (4, 16, 16), jnp.float32)
    x_group = jax.random.normal(k2, (2, 4, 16, 16), jnp.float32)

    out = jax.block_until_ready(div_forward(x_single, x_group))

    ref = _reference_div(x_single, x_group)
    assert out.shape == (), out.shape
    assert jnp.allclose(out, ref, atol=1e-5, rtol=1e-5), (out, ref)

    print("KERNEL_OK")
</pallas_src>

<mosaic_0001>
module attributes {stable_mosaic.version = 11 : i64} {
  func.func @_div_kernel(%arg0: i32, %arg1: i32, %arg2: memref<8x128xf32, #tpu.memory_space<vmem>>, %arg3: memref<2x8x128xf32, #tpu.memory_space<vmem>>, %arg4: memref<1x3x8x128xf32, #tpu.memory_space<vmem>>) attributes {dimension_semantics = [#tpu.dimension_semantics<parallel>, #tpu.dimension_semantics<arbitrary>], iteration_bounds = array<i64: 2, 1>, scalar_prefetch = 0 : i64, scratch_operands = 0 : i64, tpu.core_type = #tpu.core_type<tc>, window_params = [{transform_indices = @transform_0, window_bounds = array<i64: 8, 128>}, {transform_indices = @transform_1, window_bounds = array<i64: 2, 8, 128>}, {transform_indices = @transform_2, window_bounds = array<i64: 1, 3, 8, 128>}]} {
    %c0_i32 = arith.constant 0 : i32
    %0 = arith.cmpi eq, %arg1, %c0_i32 : i32
    %1 = arith.extui %0 : i1 to i32
    %c0_i32_0 = arith.constant 0 : i32
    %2 = arith.cmpi ne, %1, %c0_i32_0 : i32
    scf.if %2 {
      %cst_33 = arith.constant 0.000000e+00 : f32
      %45 = vector.broadcast %cst_33 : f32 to vector<3x8x128xf32>
      %c0_34 = arith.constant 0 : index
      %c0_35 = arith.constant 0 : index
      %c0_36 = arith.constant 0 : index
      %c0_37 = arith.constant 0 : index
      %46 = vector.load %arg4[%c0_34, %c0_35, %c0_36, %c0_37] : memref<1x3x8x128xf32, #tpu.memory_space<vmem>>, vector<1x3x8x128xf32>
      %47 = vector.shape_cast %46 : vector<1x3x8x128xf32> to vector<3x8x128xf32>
      %48 = vector.shape_cast %45 : vector<3x8x128xf32> to vector<1x3x8x128xf32>
      tpu.vector_store %arg4[%c0_34, %c0_35, %c0_36, %c0_37], %48 {strides = array<i32>} : memref<1x3x8x128xf32, #tpu.memory_space<vmem>>, vector<1x3x8x128xf32>,
    } else {
    }
    %c0 = arith.constant 0 : index
    %c0_1 = arith.constant 0 : index
    %3 = vector.load %arg2[%c0, %c0_1] : memref<8x128xf32, #tpu.memory_space<vmem>>, vector<8x128xf32>
    %c0_2 = arith.constant 0 : index
    %c0_3 = arith.constant 0 : index
    %c0_4 = arith.constant 0 : index
    %4 = vector.load %arg3[%c0_2, %c0_3, %c0_4] : memref<2x8x128xf32, #tpu.memory_space<vmem>>, vector<2x8x128xf32>
    %cst = arith.constant dense<0.000000e+00> : vector<8x128xf32>
    %5 = vector.multi_reduction <add>, %4, %cst [0] : vector<2x8x128xf32> to vector<8x128xf32>
    %c1_i32 = arith.constant 1 : i32
    %6 = arith.muli %arg0, %c1_i32 : i32
    %7 = arith.addi %6, %arg1 : i32
    %c8_i32 = arith.constant 8 : i32
    %8 = arith.muli %7, %c8_i32 : i32
    %9 = tpu.iota {dimensions = array<i32: 0>} : vector<8x128xi32>
    %10 = vector.broadcast %8 : i32 to vector<8x128xi32>
    %11 = arith.addi %9, %10 : vector<8x128xi32>
    %c8_i32_5 = arith.constant 8 : i32
    %12 = vector.broadcast %c8_i32_5 : i32 to vector<8x128xi32>
    %13 = arith.cmpi slt, %11, %12 : vector<8x128xi32>
    %cst_6 = arith.constant 0.000000e+00 : f32
    %14 = vector.broadcast %cst_6 : f32 to vector<8x128xf32>
    %15 = arith.select %13, %3, %14 : vector<8x128xi1>, vector<8x128xf32>
    %cst_7 = arith.constant 0.000000e+00 : f32
    %16 = vector.broadcast %cst_7 : f32 to vector<8x128xf32>
    %17 = arith.select %13, %5, %16 : vector<8x128xi1>, vector<8x128xf32>
    %18 = arith.mulf %15, %15 : vector<8x128xf32>
    %19 = vector.shape_cast %18 : vector<8x128xf32> to vector<1x8x128xf32>
    %cst_8 = arith.constant dense<0.000000e+00> : vector<8x128xf32>
    %20 = vector.multi_reduction <add>, %19, %cst_8 [0] : vector<1x8x128xf32> to vector<8x128xf32>
    %21 = arith.mulf %17, %17 : vector<8x128xf32>
    %22 = vector.shape_cast %21 : vector<8x128xf32> to vector<1x8x128xf32>
    %cst_9 = arith.constant dense<0.000000e+00> : vector<8x128xf32>
    %23 = vector.multi_reduction <add>, %22, %cst_9 [0] : vector<1x8x128xf32> to vector<8x128xf32>
    %24 = arith.mulf %15, %17 : vector<8x128xf32>
    %25 = vector.shape_cast %24 : vector<8x128xf32> to vector<1x8x128xf32>
    %cst_10 = arith.constant dense<0.000000e+00> : vector<8x128xf32>
    %26 = vector.multi_reduction <add>, %25, %cst_10 [0] : vector<1x8x128xf32> to vector<8x128xf32>
    %c0_11 = arith.constant 0 : index
    %c0_12 = arith.constant 0 : index
    %c0_13 = arith.constant 0 : index
    %c0_14 = arith.constant 0 : index
    %27 = vector.load %arg4[%c0_11, %c0_12, %c0_13, %c0_14] : memref<1x3x8x128xf32, #tpu.memory_space<vmem>>, vector<1x1x8x128xf32>
    %28 = vector.shape_cast %27 : vector<1x1x8x128xf32> to vector<8x128xf32>
    %29 = arith.addf %28, %20 : vector<8x128xf32>
    %c0_15 = arith.constant 0 : index
    %c0_16 = arith.constant 0 : index
    %c0_17 = arith.constant 0 : index
    %c0_18 = arith.constant 0 : index
    %30 = vector.load %arg4[%c0_15, %c0_16, %c0_17, %c0_18] : memref<1x3x8x128xf32, #tpu.memory_space<vmem>>, vector<1x1x8x128xf32>
    %31 = vector.shape_cast %30 : vector<1x1x8x128xf32> to vector<8x128xf32>
    %32 = vector.shape_cast %29 : vector<8x128xf32> to vector<1x1x8x128xf32>
    tpu.vector_store %arg4[%c0_15, %c0_16, %c0_17, %c0_18], %32 {strides = array<i32>} : memref<1x3x8x128xf32, #tpu.memory_space<vmem>>, vector<1x1x8x128xf32>,
    %c0_19 = arith.constant 0 : index
    %c1 = arith.constant 1 : index
    %c0_20 = arith.constant 0 : index
    %c0_21 = arith.constant 0 : index
    %33 = vector.load %arg4[%c0_19, %c1, %c0_20, %c0_21] : memref<1x3x8x128xf32, #tpu.memory_space<vmem>>, vector<1x1x8x128xf32>
    %34 = vector.shape_cast %33 : vector<1x1x8x128xf32> to vector<8x128xf32>
    %35 = arith.addf %34, %23 : vector<8x128xf32>
    %c0_22 = arith.constant 0 : index
    %c1_23 = arith.constant 1 : index
    %c0_24 = arith.constant 0 : index
    %c0_25 = arith.constant 0 : index
    %36 = vector.load %arg4[%c0_22, %c1_23, %c0_24, %c0_25] : memref<1x3x8x128xf32, #tpu.memory_space<vmem>>, vector<1x1x8x128xf32>
    %37 = vector.shape_cast %36 : vector<1x1x8x128xf32> to vector<8x128xf32>
    %38 = vector.shape_cast %35 : vector<8x128xf32> to vector<1x1x8x128xf32>
    tpu.vector_store %arg4[%c0_22, %c1_23, %c0_24, %c0_25], %38 {strides = array<i32>} : memref<1x3x8x128xf32, #tpu.memory_space<vmem>>, vector<1x1x8x128xf32>,
    %c0_26 = arith.constant 0 : index
    %c2 = arith.constant 2 : index
    %c0_27 = arith.constant 0 : index
    %c0_28 = arith.constant 0 : index
    %39 = vector.load %arg4[%c0_26, %c2, %c0_27, %c0_28] : memref<1x3x8x128xf32, #tpu.memory_space<vmem>>, vector<1x1x8x128xf32>
    %40 = vector.shape_cast %39 : vector<1x1x8x128xf32> to vector<8x128xf32>
    %41 = arith.addf %40, %26 : vector<8x128xf32>
    %c0_29 = arith.constant 0 : index
    %c2_30 = arith.constant 2 : index
    %c0_31 = arith.constant 0 : index
    %c0_32 = arith.constant 0 : index
    %42 = vector.load %arg4[%c0_29, %c2_30, %c0_31, %c0_32] : memref<1x3x8x128xf32, #tpu.memory_space<vmem>>, vector<1x1x8x128xf32>
    %43 = vector.shape_cast %42 : vector<1x1x8x128xf32> to vector<8x128xf32>
    %44 = vector.shape_cast %41 : vector<8x128xf32> to vector<1x1x8x128xf32>
    tpu.vector_store %arg4[%c0_29, %c2_30, %c0_31, %c0_32], %44 {strides = array<i32>} : memref<1x3x8x128xf32, #tpu.memory_space<vmem>>, vector<1x1x8x128xf32>,
    return
  }
  func.func @transform_0(%arg0: i32, %arg1: i32) -> (i32, i32) {
    %c1_i32 = arith.constant 1 : i32
    %0 = arith.muli %arg0, %c1_i32 : i32
    %1 = arith.addi %0, %arg1 : i32
    %c0_i32 = arith.constant 0 : i32
    %2 = arith.minsi %1, %c0_i32 : i32
    %c0_i32_0 = arith.constant 0 : i32
    %c0_i32_1 = arith.constant 0 : i32
    return %2, %c0_i32_0 : i32, i32
  }
  func.func @transform_1(%arg0: i32, %arg1: i32) -> (i32, i32, i32) {
    %c1_i32 = arith.constant 1 : i32
    %0 = arith.muli %arg0, %c1_i32 : i32
    %1 = arith.addi %0, %arg1 : i32
    %c0_i32 = arith.constant 0 : i32
    %2 = arith.minsi %1, %c0_i32 : i32
    %c0_i32_0 = arith.constant 0 : i32
    %c0_i32_1 = arith.constant 0 : i32
    %c0_i32_2 = arith.constant 0 : i32
    return %c0_i32_0, %2, %c0_i32_1 : i32, i32, i32
  }
  func.func @transform_2(%arg0: i32, %arg1: i32) -> (i32, i32, i32, i32) {
    %c0_i32 = arith.constant 0 : i32
    %c0_i32_0 = arith.constant 0 : i32
    %c0_i32_1 = arith.constant 0 : i32
    %c0_i32_2 = arith.constant 0 : i32
    return %arg0, %c0_i32, %c0_i32_0, %c0_i32_1 : i32, i32, i32, i32
  }
}

</mosaic_0001>

<llo_original>
// kernel: div_forward.1
$region0: #{div_forward.1}
  #allocation0 [shape = 'u32[]', space=smem, size = 0x4, offset = 0x4, fixed_abs, tag = 'smem constant byte address 0x4 - core index']
  #allocation1 [shape = 'u32[72,128]{1,0:T(1,128)}', space=vmem, size = 0x9000, scoped, tag = 'internal scratch']
  %s0 = inlined_call_operand.vmem [shape: f32[8,128], index: 0, kind: input, shape index: {}]
  %s1 = inlined_call_operand.vmem [shape: f32[2,8,128], index: 1, kind: input, shape index: {}]
  %s2 = inlined_call_operand.vmem [shape: f32[2,3,8,128], index: 2, kind: output, shape index: {}]
  %s3 = sld [smem:[#allocation0]]
  $region45: #{div_forward.1} parent=0
    _
  %s5 = ssub.s32 1, %s3
  %s6 = scalar_select 0, %s5, %s3
  loop: start=0, step=1, limit=4
  $region2: #{div_forward.1} parent=0 // loop_pre_header
    _
  $region3: #{div_forward.1} parent=0 // loop_header
    %s8 = sphi 0, %s12
    %p9 = scmp.ge.s32.totalorder %s8, 4
    %s15 = sphi 0, %s27
    %s16 = sphi 0, %s23
    %s17 = sphi 0, %s15
    %s18 = sphi 0, %s16
    %s19 = sphi 0, %s17
    %s20 = sphi 0, %s18
    %s36 = sphi 0, %s38
    %s39 = sphi 0, %s36
    %s40 = sphi 0, %s39
    %s56 = sphi 0, %s40
    %s68 = sphi 0, %s70
    %s71 = sphi 0, %s68
    %s72 = sphi 0, %s71
    %s88 = sphi 0, %s72
    %s94 = sphi 0, %s96
    %s97 = sphi 0, %s94
    %s98 = sphi 0, %s97
    %s114 = sphi 0, %s98
  $region4: #{div_forward.1} parent=0 // loop_header_branch
    %11 = sbr.rel (%p9) target = $region8
  $region5: #{div_forward.1} parent=0 // loop_body
    %s13 = ssub.s32 %s8, 1
    %s14 = ssub.s32 %s8, 2
    %s21 = sadd.s32 1, %s16
    %p22 = scmp.ge.s32.totalorder %s21, 1
    %s23 = scalar_select %p22, 0, %s21
    %s24 = sadd.s32 1, %s15
    %s25 = scalar_select %p22, %s24, %s15
    %p26 = scmp.ge.s32.totalorder %s25, 2
    %s27 = scalar_select %p26, 0, %s25
    %s28 = sadd.s32 %s15, %s16
    %p29 = scmp.lt.s32.totalorder %s28, 0
    %s30 = scalar_select %p29, %s28, 0
    %s31 = sadd.s32 %s27, %s23
    %p32 = scmp.lt.s32.totalorder %s31, 0
    %s33 = scalar_select %p32, %s31, 0
    %s34 = ssub.s32 %s30, %s33
    %p35 = scmp.eq.s32.totalorder %s34, 0
    %s37 = sadd.s32 %s36, 1
    %s38 = scalar_select %p35, %s36, %s37
    %p41 = pneg %p35
    %p42 = scmp.eq.s32.totalorder %s8, 1
    %p43 = por %p41, %p42
    %p44 = scmp.ne.s32.totalorder %s36, %s39
    %p45 = scmp.eq.s32.totalorder %s8, 0
    %p46 = por %p44, %p45
    %p47 = scmp.ne.s32.totalorder %s36, %s39
    %p48 = scmp.eq.s32.totalorder %s13, 1
    %p49 = por %p47, %p48
    %p50 = scmp.ne.s32.totalorder %s39, %s40
    %p51 = scmp.eq.s32.totalorder %s13, 0
    %p52 = por %p50, %p51
    %p53 = scmp.ne.s32.totalorder %s39, %s40
    %p54 = scmp.eq.s32.totalorder %s14, 1
    %p55 = por %p53, %p54
    %p57 = scmp.ne.s32.totalorder %s40, %s56
    %p58 = scmp.eq.s32.totalorder %s14, 0
    %p59 = por %p57, %p58
    %s60 = sadd.s32 %s15, %s16
    %p61 = scmp.lt.s32.totalorder %s60, 0
    %s62 = scalar_select %p61, %s60, 0
    %s63 = sadd.s32 %s27, %s23
    %p64 = scmp.lt.s32.totalorder %s63, 0
    %s65 = scalar_select %p64, %s63, 0
    %s66 = ssub.s32 %s62, %s65
    %p67 = scmp.eq.s32.totalorder %s66, 0
    %s69 = sadd.s32 %s68, 1
    %s70 = scalar_select %p67, %s68, %s69
    %p73 = pneg %p67
    %p74 = scmp.eq.s32.totalorder %s8, 1
    %p75 = por %p73, %p74
    %p76 = scmp.ne.s32.totalorder %s68, %s71
    %p77 = scmp.eq.s32.totalorder %s8, 0
    %p78 = por %p76, %p77
    %p79 = scmp.ne.s32.totalorder %s68, %s71
    %p80 = scmp.eq.s32.totalorder %s13, 1
    %p81 = por %p79, %p80
    %p82 = scmp.ne.s32.totalorder %s71, %s72
    %p83 = scmp.eq.s32.totalorder %s13, 0
    %p84 = por %p82, %p83
    %p85 = scmp.ne.s32.totalorder %s71, %s72
    %p86 = scmp.eq.s32.totalorder %s14, 1
    %p87 = por %p85, %p86
    %p89 = scmp.ne.s32.totalorder %s72, %s88
    %p90 = scmp.eq.s32.totalorder %s14, 0
    %p91 = por %p89, %p90
    %s92 = ssub.s32 %s15, %s27
    %p93 = scmp.eq.s32.totalorder %s92, 0
    %s95 = sadd.s32 %s94, 1
    %s96 = scalar_select %p93, %s94, %s95
    %p99 = pneg %p93
    %p100 = scmp.eq.s32.totalorder %s8, 1
    %p101 = por %p99, %p100
    %p102 = scmp.ne.s32.totalorder %s94, %s97
    %p103 = scmp.eq.s32.totalorder %s8, 0
    %p104 = por %p102, %p103
    %p105 = scmp.ne.s32.totalorder %s94, %s97
    %p106 = scmp.eq.s32.totalorder %s13, 1
    %p107 = por %p105, %p106
    %p108 = scmp.ne.s32.totalorder %s97, %s98
    %p109 = scmp.eq.s32.totalorder %s13, 0
    %p110 = por %p108, %p109
    %p111 = scmp.ne.s32.totalorder %s97, %s98
    %p112 = scmp.eq.s32.totalorder %s14, 1
    %p113 = por %p111, %p112
    %p115 = scmp.ne.s32.totalorder %s98, %s114
    %p116 = scmp.eq.s32.totalorder %s14, 0
    %p117 = por %p115, %p116
    %p118 = scmp.le.s32.totalorder 1, %s8
    %p119 = scmp.lt.s32.totalorder %s8, 3
    %p120 = pnand %p118, %p119
    %p121 = pneg %p120
    // Predicated region
    $region9: #{div_forward.1} parent=5 // pred_check
      _
    $region10: #{div_forward.1} parent=5 // pred_check_branch
      %123 = sbr.rel (%p120) target = $region12
    $region11: #{div_forward.1} parent=5 // pred_region
      %s124 = ssub.s32 %s8, 1
    $region12: #{div_forward.1} parent=5 // pred_fallthru
      _
    %p125 = scmp.lt.s32.totalorder %s8, 2
    // Predicated region
    $region13: #{div_forward.1} parent=5 // pred_check
      %p126 = pneg %p125
    $region14: #{div_forward.1} parent=5 // pred_check_branch
      %128 = sbr.rel (%p126) target = $region16
    $region15: #{div_forward.1} parent=5 // pred_region
      // Predicated region
      $region17: #{div_forward.1} parent=15 // pred_check
        %p129 = pneg %p46
      $region18: #{div_forward.1} parent=15 // pred_check_branch
        %131 = sbr.rel (%p129) target = $region20
      $region19: #{div_forward.1} parent=15 // pred_region
        %s132 = sadd.s32 %s15, %s16
        %p133 = scmp.lt.s32.totalorder %s132, 0
        %s134 = scalar_select %p133, %s132, 0
        %p135 = scmp.lt.s32.totalorder %s134, 0
        %s136 = scalar_select %p135, %s134, 0
        %s137 = smul.addr %s136, 8
        %s138 = scalar_lea.vmem %s0, %s137
        %s139 = sadd.s32 %s15, %s16
        %p140 = scmp.lt.s32.totalorder %s139, 0
        %s141 = scalar_select %p140, %s139, 0
      $region20: #{div_forward.1} parent=15 // pred_fallthru
        _
      // Predicated region
      $region21: #{div_forward.1} parent=15 // pred_check
        %p142 = pneg %p78
      $region22: #{div_forward.1} parent=15 // pred_check_branch
        %144 = sbr.rel (%p142) target = $region24
      $region23: #{div_forward.1} parent=15 // pred_region
        %s145 = sadd.s32 %s15, %s16
        %p146 = scmp.lt.s32.totalorder %s145, 0
        %s147 = scalar_select %p146, %s145, 0
        %p148 = scmp.lt.s32.totalorder %s147, 0
        %s149 = scalar_select %p148, %s147, 0
        %s150 = smul.addr %s149, 8
        %s151 = scalar_lea.vmem %s1, %s150
        %s152 = sadd.s32 %s15, %s16
        %p153 = scmp.lt.s32.totalorder %s152, 0
        %s154 = scalar_select %p153, %s152, 0
      $region24: #{div_forward.1} parent=15 // pred_fallthru
        _
    $region16: #{div_forward.1} parent=5 // pred_fallthru
      _
    %p155 = scmp.le.s32.totalorder 1, %s8
    %p156 = scmp.lt.s32.totalorder %s8, 3
    %p157 = pnand %p155, %p156
    %p158 = pneg %p157
    // Predicated region
    $region25: #{div_forward.1} parent=5 // pred_check
      _
    $region26: #{div_forward.1} parent=5 // pred_check_branch
      %160 = sbr.rel (%p157) target = $region28
    $region27: #{div_forward.1} parent=5 // pred_region
      %s161 = ssub.s32 %s8, 1
      %s162 = sadd.s32 %s17, %s18
      %p163 = scmp.lt.s32.totalorder %s162, 0
      %s164 = scalar_select %p163, %s162, 0
      %p165 = scmp.lt.s32.totalorder %s164, 0
      %s166 = scalar_select %p165, %s164, 0
      %s167 = smul.addr %s166, 8
      %s168 = scalar_lea.vmem %s0, %s167
      %p169 = pneg %p52
      %p170 = pneg %p49
      %s171 = sadd.s32 %s17, %s18
      %p172 = scmp.lt.s32.totalorder %s171, 0
      %s173 = scalar_select %p172, %s171, 0
      %p174 = scmp.lt.s32.totalorder %s173, 0
      %s175 = scalar_select %p174, %s173, 0
      %s176 = smul.addr %s175, 8
      %s177 = scalar_lea.vmem %s1, %s176
      %p178 = pneg %p84
      %p179 = pneg %p81
      %p180 = pneg %p110
      %p181 = pneg %p107
      %p182 = scmp.lt.s32.totalorder %s17, 1
      %s183 = scalar_select %p182, %s17, 1
      %s184 = smul.addr %s183, 3
      %s185 = smul.addr %s184, 8
      %s186 = scalar_lea.vmem %s2, %s185
      %s187 = sadd.s32 %s17, %s18
      %p188 = scmp.lt.s32.totalorder %s187, 0
      %s189 = scalar_select %p188, %s187, 0
      %p190 = scmp.lt.s32.totalorder %s189, 0
      %s191 = scalar_select %p190, %s189, 0
      %s192 = smul.addr %s191, 8
      %s193 = scalar_lea.vmem %s0, %s192
      %s194 = sadd.s32 %s17, %s18
      %p195 = scmp.lt.s32.totalorder %s194, 0
      %s196 = scalar_select %p195, %s194, 0
      %s197 = sadd.s32 %s17, %s18
      %p198 = scmp.lt.s32.totalorder %s197, 0
      %s199 = scalar_select %p198, %s197, 0
      %p200 = scmp.lt.s32.totalorder %s199, 0
      %s201 = scalar_select %p200, %s199, 0
      %s202 = smul.addr %s201, 8
      %s203 = scalar_lea.vmem %s1, %s202
      %s204 = sadd.s32 %s17, %s18
      %p205 = scmp.lt.s32.totalorder %s204, 0
      %s206 = scalar_select %p205, %s204, 0
      %p207 = scmp.lt.s32.totalorder %s17, 1
      %s208 = scalar_select %p207, %s17, 1
      %s209 = smul.addr %s208, 3
      %s210 = smul.addr %s209, 8
      %s211 = scalar_lea.vmem %s2, %s210
      %p212 = scmp.eq.s32.totalorder %s18, 0
      // Predicated region
      $region29: #{div_forward.1} parent=27 // pred_check
        %p213 = pneg %p212
      $region30: #{div_forward.1} parent=27 // pred_check_branch
        %215 = sbr.rel (%p213) target = $region32
      $region31: #{div_forward.1} parent=27 // pred_region
        %216 = vst [vmem:[%s211] sm:$0xff] 0.0
        %217 = vst [vmem:[%s211 + $0x8] sm:$0xff] 0.0
        %218 = vst [vmem:[%s211 + $0x10] sm:$0xff] 0.0
      $region32: #{div_forward.1} parent=27 // pred_fallthru
        _
      %v219 = vld [vmem:[%s193] sm:$0xff]
      %v220 = vld [vmem:[%s203] sm:$0xff]
      %v221 = vld [vmem:[%s203 + $0x8] sm:$0xff]
      %v222 = vadd.f32 %v220, %v221
      %s223 = sadd.s32 %s17, %s18
      %s224 = smul.u32 %s223, 8
      %v225 = vlaneseq
      %v226 = vshrl.u32 %v225, 7
      %v227 = vstv %s224
      %v228 = vadd.s32 %v226, %v227
      %vm229 = vcmp.lt.s32.totalorder %v228, 8
      %v230 = vsel %vm229, %v219, 0.0
      %v231 = vsel %vm229, %v222, 0.0
      %v232 = vmul.f32 %v230, %v230
      %v233 = vadd.f32 %v232, 0.0
      %v234 = vmul.f32 %v231, %v231
      %v235 = vadd.f32 %v234, 0.0
      %v236 = vmul.f32 %v230, %v231
      %v237 = vadd.f32 %v236, 0.0
      %v238 = vld [vmem:[%s211] sm:$0xff]
      %v239 = vadd.f32 %v238, %v233
      %240 = vst [vmem:[%s211] sm:$0xff] %v239
      %s241 = scalar_lea.vmem %s211, 8
      %v242 = vld [vmem:[%s241] sm:$0xff]
      %v243 = vadd.f32 %v242, %v235
      %244 = vst [vmem:[%s241] sm:$0xff] %v243
      %s245 = scalar_lea.vmem %s211, 16
      %v246 = vld [vmem:[%s245] sm:$0xff]
      %v247 = vadd.f32 %v246, %v237
      %248 = vst [vmem:[%s245] sm:$0xff] %v247
      %p249 = scmp.lt.s32.totalorder %s17, 1
      %s250 = scalar_select %p249, %s17, 1
      %s251 = smul.addr %s250, 3
      %s252 = smul.addr %s251, 8
      %s253 = scalar_lea.vmem %s2, %s252
      // Predicated region
      $region33: #{div_forward.1} parent=27 // pred_check
        %p254 = pneg %p107
      $region34: #{div_forward.1} parent=27 // pred_check_branch
        %256 = sbr.rel (%p254) target = $region36
      $region35: #{div_forward.1} parent=27 // pred_region
        _
      $region36: #{div_forward.1} parent=27 // pred_fallthru
        _
    $region28: #{div_forward.1} parent=5 // pred_fallthru
      _
    %p257 = scmp.le.s32.totalorder 2, %s8
    // Predicated region
    $region37: #{div_forward.1} parent=5 // pred_check
      %p258 = pneg %p257
    $region38: #{div_forward.1} parent=5 // pred_check_branch
      %260 = sbr.rel (%p258) target = $region40
    $region39: #{div_forward.1} parent=5 // pred_region
      %s261 = ssub.s32 %s8, 2
      // Predicated region
      $region41: #{div_forward.1} parent=39 // pred_check
        %p262 = pneg %p113
      $region42: #{div_forward.1} parent=39 // pred_check_branch
        %264 = sbr.rel (%p262) target = $region44
      $region43: #{div_forward.1} parent=39 // pred_region
        %p265 = scmp.lt.s32.totalorder %s19, 1
        %s266 = scalar_select %p265, %s19, 1
        %s267 = smul.addr %s266, 3
        %s268 = smul.addr %s267, 8
        %s269 = scalar_lea.vmem %s2, %s268
      $region44: #{div_forward.1} parent=39 // pred_fallthru
        _
    $region40: #{div_forward.1} parent=5 // pred_fallthru
      _
  $region6: #{div_forward.1} parent=0 // loop_footer
    %s12 = sadd.s32 1, %s8
  $region7: #{div_forward.1} parent=0 // loop_footer_branch
    %7 = sbr.rel target = $region3
  $region8: #{div_forward.1} parent=0 // loop_exit
    _

</llo_original>
